<compile_context>
chip_gen: v7x
topology: tpu7x:2x2x1
jax: 0.10.0
libtpu: 0.0.40
codegen_flags: <defaults>
</compile_context>

<pallas_src>
import jax
import jax.numpy as jnp
from jax.experimental import pallas as pl

EPS = 1e-5
LANE = 128


def _round_up(n, m):
    return ((n + m - 1) // m) * m


def _pad2(a, rows, cols):
    return jnp.pad(a, ((0, rows - a.shape[0]), (0, cols - a.shape[1])))


def _bn_relu(h, gamma, beta):
    # BatchNorm1d in training mode: per-feature batch mean, biased batch variance.
    mean = jnp.mean(h, axis=0, keepdims=True)
    var = jnp.mean((h - mean) ** 2, axis=0, keepdims=True)
    hn = (h - mean) * jax.lax.rsqrt(var + EPS)
    return jnp.maximum(hn * gamma + beta, 0.0)


def classifier_mlp_kernel(x_ref, w1_ref, wmid_ref, w5_ref, pb_ref, o_ref):
    """Fused 5-layer MLP.

    x_ref   : (B, Din_p)       activations, features on lanes
    w1_ref  : (Din_p, L_p)     first Linear weight (pre-transposed, zero-padded)
    wmid_ref: (3, L_p, L_p)    w2..w4 stacked
    w5_ref  : (L_p, O_p)       final Linear weight
    pb_ref  : (16, W)          rows 2l / 2l+1 = gamma_l / beta_l (l=0..3), row 8 = b5
    o_ref   : (B, O_p)         lane-dense padded output
    """
    lp = w1_ref.shape[1]
    op = w5_ref.shape[1]

    # Load the whole small-parameter slab once, up front.
    pb = pb_ref[...]

    h = jnp.dot(x_ref[...], w1_ref[...], preferred_element_type=jnp.float32)
    h = _bn_relu(h, pb[0:1, :lp], pb[1:2, :lp])
    for l in range(3):
        h = jnp.dot(h, wmid_ref[l], preferred_element_type=jnp.float32)
        g = pb[2 * (l + 1): 2 * (l + 1) + 1, :lp]
        b = pb[2 * (l + 1) + 1: 2 * (l + 1) + 2, :lp]
        h = _bn_relu(h, g, b)
    o_ref[...] = (jnp.dot(h, w5_ref[...], preferred_element_type=jnp.float32)
                  + pb[8:9, :op])


def pack_params(params, d_in):
    """Pack/pad the 18 module parameters into 4 kernel slabs.

    params layout (all f32, weights pre-transposed to (in, out)):
      [w1,b1,g1,be1, w2,b2,g2,be2, w3,b3,g3,be3, w4,b4,g4,be4, w5,b5]
    b1..b4 are dropped: they are exactly cancelled by training-mode BatchNorm.
    Padded weight rows/cols and gamma/beta entries are zero, so padded feature
    columns stay identically zero through every layer.
    """
    L = params[0].shape[1]
    O = params[16].shape[1]
    d_in_p = _round_up(d_in, LANE)
    L_p = _round_up(L, LANE)
    O_p = _round_up(O, LANE)
    W = max(L_p, O_p)

    w1 = _pad2(params[0], d_in_p, L_p)
    w_mid = jnp.stack([_pad2(params[4 * l], L_p, L_p) for l in (1, 2, 3)])
    w5 = _pad2(params[16], L_p, O_p)

    rows = []
    for l in range(4):
        rows.append(_pad2(params[4 * l + 2], 1, W))   # gamma_l
        rows.append(_pad2(params[4 * l + 3], 1, W))   # beta_l
    rows.append(_pad2(params[17], 1, W))              # b5
    pb = jnp.concatenate(rows, axis=0)
    pb = jnp.pad(pb, ((0, 16 - pb.shape[0]), (0, 0)))
    return (w1, w_mid, w5, pb), (d_in_p, L_p, O_p, O)


def classifier_mlp_forward(x, params):
    """x: (B, D_in) f32. params: flat list of 18 arrays (see init_params)."""
    B, d_in = x.shape
    (w1, w_mid, w5, pb), (d_in_p, L_p, O_p, O) = pack_params(params, d_in)
    x_p = _pad2(x, B, d_in_p)

    args = [x_p, w1, w_mid, w5, pb]
    out_shape = jax.ShapeDtypeStruct((B, O_p), jnp.float32)

    in_specs = [pl.BlockSpec(a.shape, lambda i, _nd=a.ndim: (0,) * _nd)
                for a in args]
    out_specs = pl.BlockSpec((B, O_p), lambda i: (0, 0))

    out = pl.pallas_call(
        classifier_mlp_kernel,
        out_shape=out_shape,
        grid_spec=pl.GridSpec(grid=(1,), in_specs=in_specs, out_specs=out_specs),
    )(*args)
    return out[:, :O]


def init_params(key, d_in, layer_size, output_shape):
    """Deterministic init matching _weight_init():
       ALinear weights ~ N(0, 0.2), biases ~ N(0.5, 0.01);
       BatchNorm1d gamma=1, beta=0.  Weights stored pre-transposed to (in, out)."""
    dims = [(d_in, layer_size), (layer_size, layer_size),
            (layer_size, layer_size), (layer_size, layer_size)]
    params = []
    for (fin, fout) in dims:
        key, kw, kb = jax.random.split(key, 3)
        w = 0.2 * jax.random.normal(kw, (fin, fout), jnp.float32)
        b = 0.5 + 0.01 * jax.random.normal(kb, (1, fout), jnp.float32)
        gamma = jnp.ones((1, fout), jnp.float32)
        beta = jnp.zeros((1, fout), jnp.float32)
        params += [w, b, gamma, beta]
    key, kw, kb = jax.random.split(key, 3)
    w5 = 0.2 * jax.random.normal(kw, (layer_size, output_shape), jnp.float32)
    b5 = 0.5 + 0.01 * jax.random.normal(kb, (1, output_shape), jnp.float32)
    params += [w5, b5]
    return params


def reference_forward(x, params, use_hidden_biases=True):
    """Pure-JAX reference.  use_hidden_biases=True is the original module forward;
    False is the mathematically identical bias-free form the kernel computes
    (train-mode BN cancels constant per-feature shifts)."""
    h = x
    for layer in range(4):
        w, b, g, be = params[4 * layer: 4 * layer + 4]
        z = h @ w
        if use_hidden_biases:
            z = z + b
        h = _bn_relu(z, g, be)
    return h @ params[16] + params[17]


if __name__ == "__main__":
    # Small shapes consistent with the module's MLP structure.
    B = 8                  # batch
    num_channels = 1
    input_size = 128       # num_channels * input_size = flattened features
    layer_size = 64
    output_shape = 55

    key = jax.random.PRNGKey(0)
    key, kx = jax.random.split(key)
    x = jax.random.normal(kx, (B, num_channels * input_size), jnp.float32)
    params = init_params(key, num_channels * input_size, layer_size, output_shape)

    out = jax.block_until_ready(classifier_mlp_forward(x, params))
    assert out.shape == (B, output_shape)

    # Tight check against the exact math the kernel implements (hidden biases
    # dropped — identical to the module forward under train-mode BatchNorm).
    ref = reference_forward(x, params, use_hidden_biases=False)
    assert jnp.allclose(out, ref, atol=1e-4, rtol=1e-4), (
        "Pallas output mismatch vs bias-free JAX reference")

    # Sanity check against the literal original forward (with the redundant
    # hidden-layer biases); generous tolerance absorbs precision-dependent
    # rounding of the bias cancellation.
    ref_full = reference_forward(x, params, use_hidden_biases=True)
    max_diff = float(jnp.max(jnp.abs(out - ref_full)))
    assert max_diff < 5e-2, f"bias-cancellation sanity check failed: {max_diff}"

    print("KERNEL_OK")
</pallas_src>

<mosaic_0001>
module attributes {stable_mosaic.version = 11 : i64} {
  func.func @classifier_mlp_kernel(%arg0: i32, %arg1: memref<8x128xf32, #tpu.memory_space<vmem>>, %arg2: memref<128x128xf32, #tpu.memory_space<vmem>>, %arg3: memref<3x128x128xf32, #tpu.memory_space<vmem>>, %arg4: memref<128x128xf32, #tpu.memory_space<vmem>>, %arg5: memref<16x128xf32, #tpu.memory_space<vmem>>, %arg6: memref<8x128xf32, #tpu.memory_space<vmem>>) attributes {dimension_semantics = [#tpu.dimension_semantics<arbitrary>], iteration_bounds = array<i64: 1>, scalar_prefetch = 0 : i64, scratch_operands = 0 : i64, tpu.core_type = #tpu.core_type<tc>, window_params = [{pipeline_mode = #tpu.pipeline_mode<synchronous>, transform_indices = @transform_0, window_bounds = array<i64: 8, 128>}, {pipeline_mode = #tpu.pipeline_mode<synchronous>, transform_indices = @transform_1, window_bounds = array<i64: 128, 128>}, {pipeline_mode = #tpu.pipeline_mode<synchronous>, transform_indices = @transform_2, window_bounds = array<i64: 3, 128, 128>}, {pipeline_mode = #tpu.pipeline_mode<synchronous>, transform_indices = @transform_3, window_bounds = array<i64: 128, 128>}, {pipeline_mode = #tpu.pipeline_mode<synchronous>, transform_indices = @transform_4, window_bounds = array<i64: 16, 128>}, {pipeline_mode = #tpu.pipeline_mode<synchronous>, transform_indices = @transform_5, window_bounds = array<i64: 8, 128>}]} {
    %c0 = arith.constant 0 : index
    %c0_0 = arith.constant 0 : index
    %0 = vector.load %arg5[%c0, %c0_0] : memref<16x128xf32, #tpu.memory_space<vmem>>, vector<16x128xf32>
    %c0_1 = arith.constant 0 : index
    %c0_2 = arith.constant 0 : index
    %1 = vector.load %arg1[%c0_1, %c0_2] : memref<8x128xf32, #tpu.memory_space<vmem>>, vector<8x128xf32>
    %c0_3 = arith.constant 0 : index
    %c0_4 = arith.constant 0 : index
    %2 = vector.load %arg2[%c0_3, %c0_4] : memref<128x128xf32, #tpu.memory_space<vmem>>, vector<128x128xf32>
    %cst = arith.constant dense<0.000000e+00> : vector<8x128xf32>
    %3 = tpu.matmul %1, %2, %cst {dimension_numbers = #tpu.dot_dimension_numbers<[1], [0], [0], [1], [0, 0, 1, 1], [], []>} : vector<8x128xf32>, vector<128x128xf32>, vector<8x128xf32> -> vector<8x128xf32>
    %4 = vector.extract_strided_slice %0 {offsets = [0, 0], sizes = [1, 128], strides = [1, 1]} : vector<16x128xf32> to vector<1x128xf32>
    %5 = vector.extract_strided_slice %0 {offsets = [1, 0], sizes = [1, 128], strides = [1, 1]} : vector<16x128xf32> to vector<1x128xf32>
    %cst_5 = arith.constant dense<0.000000e+00> : vector<128xf32>
    %6 = vector.multi_reduction <add>, %3, %cst_5 [0] : vector<8x128xf32> to vector<128xf32>
    %7 = vector.shape_cast %6 : vector<128xf32> to vector<1x128xf32>
    %cst_6 = arith.constant 8.000000e+00 : f32
    %8 = vector.broadcast %cst_6 : f32 to vector<1x128xf32>
    %9 = arith.divf %7, %8 : vector<1x128xf32>
    %10 = vector.broadcast %9 : vector<1x128xf32> to vector<8x128xf32>
    %11 = arith.subf %3, %10 : vector<8x128xf32>
    %12 = arith.mulf %11, %11 : vector<8x128xf32>
    %cst_7 = arith.constant dense<0.000000e+00> : vector<128xf32>
    %13 = vector.multi_reduction <add>, %12, %cst_7 [0] : vector<8x128xf32> to vector<128xf32>
    %14 = vector.shape_cast %13 : vector<128xf32> to vector<1x128xf32>
    %cst_8 = arith.constant 8.000000e+00 : f32
    %15 = vector.broadcast %cst_8 : f32 to vector<1x128xf32>
    %16 = arith.divf %14, %15 : vector<1x128xf32>
    %17 = vector.broadcast %9 : vector<1x128xf32> to vector<8x128xf32>
    %18 = arith.subf %3, %17 : vector<8x128xf32>
    %cst_9 = arith.constant 9.99999974E-6 : f32
    %19 = vector.broadcast %cst_9 : f32 to vector<1x128xf32>
    %20 = arith.addf %16, %19 : vector<1x128xf32>
    %21 = math.rsqrt %20 : vector<1x128xf32>
    %22 = vector.broadcast %21 : vector<1x128xf32> to vector<8x128xf32>
    %23 = arith.mulf %18, %22 : vector<8x128xf32>
    %24 = vector.broadcast %4 : vector<1x128xf32> to vector<8x128xf32>
    %25 = arith.mulf %23, %24 : vector<8x128xf32>
    %26 = vector.broadcast %5 : vector<1x128xf32> to vector<8x128xf32>
    %27 = arith.addf %25, %26 : vector<8x128xf32>
    %cst_10 = arith.constant 0.000000e+00 : f32
    %28 = vector.broadcast %cst_10 : f32 to vector<8x128xf32>
    %29 = arith.maximumf %27, %28 : vector<8x128xf32>
    %c0_11 = arith.constant 0 : index
    %c0_12 = arith.constant 0 : index
    %c0_13 = arith.constant 0 : index
    %30 = vector.load %arg3[%c0_11, %c0_12, %c0_13] : memref<3x128x128xf32, #tpu.memory_space<vmem>>, vector<1x128x128xf32>
    %31 = vector.shape_cast %30 : vector<1x128x128xf32> to vector<128x128xf32>
    %cst_14 = arith.constant dense<0.000000e+00> : vector<8x128xf32>
    %32 = tpu.matmul %29, %31, %cst_14 {dimension_numbers = #tpu.dot_dimension_numbers<[1], [0], [0], [1], [0, 0, 1, 1], [], []>} : vector<8x128xf32>, vector<128x128xf32>, vector<8x128xf32> -> vector<8x128xf32>
    %33 = vector.extract_strided_slice %0 {offsets = [2, 0], sizes = [1, 128], strides = [1, 1]} : vector<16x128xf32> to vector<1x128xf32>
    %34 = vector.extract_strided_slice %0 {offsets = [3, 0], sizes = [1, 128], strides = [1, 1]} : vector<16x128xf32> to vector<1x128xf32>
    %cst_15 = arith.constant dense<0.000000e+00> : vector<128xf32>
    %35 = vector.multi_reduction <add>, %32, %cst_15 [0] : vector<8x128xf32> to vector<128xf32>
    %36 = vector.shape_cast %35 : vector<128xf32> to vector<1x128xf32>
    %cst_16 = arith.constant 8.000000e+00 : f32
    %37 = vector.broadcast %cst_16 : f32 to vector<1x128xf32>
    %38 = arith.divf %36, %37 : vector<1x128xf32>
    %39 = vector.broadcast %38 : vector<1x128xf32> to vector<8x128xf32>
    %40 = arith.subf %32, %39 : vector<8x128xf32>
    %41 = arith.mulf %40, %40 : vector<8x128xf32>
    %cst_17 = arith.constant dense<0.000000e+00> : vector<128xf32>
    %42 = vector.multi_reduction <add>, %41, %cst_17 [0] : vector<8x128xf32> to vector<128xf32>
    %43 = vector.shape_cast %42 : vector<128xf32> to vector<1x128xf32>
    %cst_18 = arith.constant 8.000000e+00 : f32
    %44 = vector.broadcast %cst_18 : f32 to vector<1x128xf32>
    %45 = arith.divf %43, %44 : vector<1x128xf32>
    %46 = vector.broadcast %38 : vector<1x128xf32> to vector<8x128xf32>
    %47 = arith.subf %32, %46 : vector<8x128xf32>
    %cst_19 = arith.constant 9.99999974E-6 : f32
    %48 = vector.broadcast %cst_19 : f32 to vector<1x128xf32>
    %49 = arith.addf %45, %48 : vector<1x128xf32>
    %50 = math.rsqrt %49 : vector<1x128xf32>
    %51 = vector.broadcast %50 : vector<1x128xf32> to vector<8x128xf32>
    %52 = arith.mulf %47, %51 : vector<8x128xf32>
    %53 = vector.broadcast %33 : vector<1x128xf32> to vector<8x128xf32>
    %54 = arith.mulf %52, %53 : vector<8x128xf32>
    %55 = vector.broadcast %34 : vector<1x128xf32> to vector<8x128xf32>
    %56 = arith.addf %54, %55 : vector<8x128xf32>
    %cst_20 = arith.constant 0.000000e+00 : f32
    %57 = vector.broadcast %cst_20 : f32 to vector<8x128xf32>
    %58 = arith.maximumf %56, %57 : vector<8x128xf32>
    %c1 = arith.constant 1 : index
    %c0_21 = arith.constant 0 : index
    %c0_22 = arith.constant 0 : index
    %59 = vector.load %arg3[%c1, %c0_21, %c0_22] : memref<3x128x128xf32, #tpu.memory_space<vmem>>, vector<1x128x128xf32>
    %60 = vector.shape_cast %59 : vector<1x128x128xf32> to vector<128x128xf32>
    %cst_23 = arith.constant dense<0.000000e+00> : vector<8x128xf32>
    %61 = tpu.matmul %58, %60, %cst_23 {dimension_numbers = #tpu.dot_dimension_numbers<[1], [0], [0], [1], [0, 0, 1, 1], [], []>} : vector<8x128xf32>, vector<128x128xf32>, vector<8x128xf32> -> vector<8x128xf32>
    %62 = vector.extract_strided_slice %0 {offsets = [4, 0], sizes = [1, 128], strides = [1, 1]} : vector<16x128xf32> to vector<1x128xf32>
    %63 = vector.extract_strided_slice %0 {offsets = [5, 0], sizes = [1, 128], strides = [1, 1]} : vector<16x128xf32> to vector<1x128xf32>
    %cst_24 = arith.constant dense<0.000000e+00> : vector<128xf32>
    %64 = vector.multi_reduction <add>, %61, %cst_24 [0] : vector<8x128xf32> to vector<128xf32>
    %65 = vector.shape_cast %64 : vector<128xf32> to vector<1x128xf32>
    %cst_25 = arith.constant 8.000000e+00 : f32
    %66 = vector.broadcast %cst_25 : f32 to vector<1x128xf32>
    %67 = arith.divf %65, %66 : vector<1x128xf32>
    %68 = vector.broadcast %67 : vector<1x128xf32> to vector<8x128xf32>
    %69 = arith.subf %61, %68 : vector<8x128xf32>
    %70 = arith.mulf %69, %69 : vector<8x128xf32>
    %cst_26 = arith.constant dense<0.000000e+00> : vector<128xf32>
    %71 = vector.multi_reduction <add>, %70, %cst_26 [0] : vector<8x128xf32> to vector<128xf32>
    %72 = vector.shape_cast %71 : vector<128xf32> to vector<1x128xf32>
    %cst_27 = arith.constant 8.000000e+00 : f32
    %73 = vector.broadcast %cst_27 : f32 to vector<1x128xf32>
    %74 = arith.divf %72, %73 : vector<1x128xf32>
    %75 = vector.broadcast %67 : vector<1x128xf32> to vector<8x128xf32>
    %76 = arith.subf %61, %75 : vector<8x128xf32>
    %cst_28 = arith.constant 9.99999974E-6 : f32
    %77 = vector.broadcast %cst_28 : f32 to vector<1x128xf32>
    %78 = arith.addf %74, %77 : vector<1x128xf32>
    %79 = math.rsqrt %78 : vector<1x128xf32>
    %80 = vector.broadcast %79 : vector<1x128xf32> to vector<8x128xf32>
    %81 = arith.mulf %76, %80 : vector<8x128xf32>
    %82 = vector.broadcast %62 : vector<1x128xf32> to vector<8x128xf32>
    %83 = arith.mulf %81, %82 : vector<8x128xf32>
    %84 = vector.broadcast %63 : vector<1x128xf32> to vector<8x128xf32>
    %85 = arith.addf %83, %84 : vector<8x128xf32>
    %cst_29 = arith.constant 0.000000e+00 : f32
    %86 = vector.broadcast %cst_29 : f32 to vector<8x128xf32>
    %87 = arith.maximumf %85, %86 : vector<8x128xf32>
    %c2 = arith.constant 2 : index
    %c0_30 = arith.constant 0 : index
    %c0_31 = arith.constant 0 : index
    %88 = vector.load %arg3[%c2, %c0_30, %c0_31] : memref<3x128x128xf32, #tpu.memory_space<vmem>>, vector<1x128x128xf32>
    %89 = vector.shape_cast %88 : vector<1x128x128xf32> to vector<128x128xf32>
    %cst_32 = arith.constant dense<0.000000e+00> : vector<8x128xf32>
    %90 = tpu.matmul %87, %89, %cst_32 {dimension_numbers = #tpu.dot_dimension_numbers<[1], [0], [0], [1], [0, 0, 1, 1], [], []>} : vector<8x128xf32>, vector<128x128xf32>, vector<8x128xf32> -> vector<8x128xf32>
    %91 = vector.extract_strided_slice %0 {offsets = [6, 0], sizes = [1, 128], strides = [1, 1]} : vector<16x128xf32> to vector<1x128xf32>
    %92 = vector.extract_strided_slice %0 {offsets = [7, 0], sizes = [1, 128], strides = [1, 1]} : vector<16x128xf32> to vector<1x128xf32>
    %cst_33 = arith.constant dense<0.000000e+00> : vector<128xf32>
    %93 = vector.multi_reduction <add>, %90, %cst_33 [0] : vector<8x128xf32> to vector<128xf32>
    %94 = vector.shape_cast %93 : vector<128xf32> to vector<1x128xf32>
    %cst_34 = arith.constant 8.000000e+00 : f32
    %95 = vector.broadcast %cst_34 : f32 to vector<1x128xf32>
    %96 = arith.divf %94, %95 : vector<1x128xf32>
    %97 = vector.broadcast %96 : vector<1x128xf32> to vector<8x128xf32>
    %98 = arith.subf %90, %97 : vector<8x128xf32>
    %99 = arith.mulf %98, %98 : vector<8x128xf32>
    %cst_35 = arith.constant dense<0.000000e+00> : vector<128xf32>
    %100 = vector.multi_reduction <add>, %99, %cst_35 [0] : vector<8x128xf32> to vector<128xf32>
    %101 = vector.shape_cast %100 : vector<128xf32> to vector<1x128xf32>
    %cst_36 = arith.constant 8.000000e+00 : f32
    %102 = vector.broadcast %cst_36 : f32 to vector<1x128xf32>
    %103 = arith.divf %101, %102 : vector<1x128xf32>
    %104 = vector.broadcast %96 : vector<1x128xf32> to vector<8x128xf32>
    %105 = arith.subf %90, %104 : vector<8x128xf32>
    %cst_37 = arith.constant 9.99999974E-6 : f32
    %106 = vector.broadcast %cst_37 : f32 to vector<1x128xf32>
    %107 = arith.addf %103, %106 : vector<1x128xf32>
    %108 = math.rsqrt %107 : vector<1x128xf32>
    %109 = vector.broadcast %108 : vector<1x128xf32> to vector<8x128xf32>
    %110 = arith.mulf %105, %109 : vector<8x128xf32>
    %111 = vector.broadcast %91 : vector<1x128xf32> to vector<8x128xf32>
    %112 = arith.mulf %110, %111 : vector<8x128xf32>
    %113 = vector.broadcast %92 : vector<1x128xf32> to vector<8x128xf32>
    %114 = arith.addf %112, %113 : vector<8x128xf32>
    %cst_38 = arith.constant 0.000000e+00 : f32
    %115 = vector.broadcast %cst_38 : f32 to vector<8x128xf32>
    %116 = arith.maximumf %114, %115 : vector<8x128xf32>
    %c0_39 = arith.constant 0 : index
    %c0_40 = arith.constant 0 : index
    %117 = vector.load %arg4[%c0_39, %c0_40] : memref<128x128xf32, #tpu.memory_space<vmem>>, vector<128x128xf32>
    %cst_41 = arith.constant dense<0.000000e+00> : vector<8x128xf32>
    %118 = tpu.matmul %116, %117, %cst_41 {dimension_numbers = #tpu.dot_dimension_numbers<[1], [0], [0], [1], [0, 0, 1, 1], [], []>} : vector<8x128xf32>, vector<128x128xf32>, vector<8x128xf32> -> vector<8x128xf32>
    %119 = vector.extract_strided_slice %0 {offsets = [8, 0], sizes = [1, 128], strides = [1, 1]} : vector<16x128xf32> to vector<1x128xf32>
    %120 = vector.broadcast %119 : vector<1x128xf32> to vector<8x128xf32>
    %121 = arith.addf %118, %120 : vector<8x128xf32>
    %c0_42 = arith.constant 0 : index
    %c0_43 = arith.constant 0 : index
    %122 = vector.load %arg6[%c0_42, %c0_43] : memref<8x128xf32, #tpu.memory_space<vmem>>, vector<8x128xf32>
    tpu.vector_store %arg6[%c0_42, %c0_43], %121 {strides = array<i32>} : memref<8x128xf32, #tpu.memory_space<vmem>>, vector<8x128xf32>,
    return
  }
  func.func @transform_0(%arg0: i32) -> (i32, i32) {
    %c0_i32 = arith.constant 0 : i32
    %c0_i32_0 = arith.constant 0 : i32
    %c0_i32_1 = arith.constant 0 : i32
    return %c0_i32, %c0_i32_0 : i32, i32
  }
  func.func @transform_1(%arg0: i32) -> (i32, i32) {
    %c0_i32 = arith.constant 0 : i32
    %c0_i32_0 = arith.constant 0 : i32
    %c0_i32_1 = arith.constant 0 : i32
    return %c0_i32, %c0_i32_0 : i32, i32
  }
  func.func @transform_2(%arg0: i32) -> (i32, i32, i32) {
    %c0_i32 = arith.constant 0 : i32
    %c0_i32_0 = arith.constant 0 : i32
    %c0_i32_1 = arith.constant 0 : i32
    %c0_i32_2 = arith.constant 0 : i32
    return %c0_i32, %c0_i32_0, %c0_i32_1 : i32, i32, i32
  }
  func.func @transform_3(%arg0: i32) -> (i32, i32) {
    %c0_i32 = arith.constant 0 : i32
    %c0_i32_0 = arith.constant 0 : i32
    %c0_i32_1 = arith.constant 0 : i32
    return %c0_i32, %c0_i32_0 : i32, i32
  }
  func.func @transform_4(%arg0: i32) -> (i32, i32) {
    %c0_i32 = arith.constant 0 : i32
    %c0_i32_0 = arith.constant 0 : i32
    %c0_i32_1 = arith.constant 0 : i32
    return %c0_i32, %c0_i32_0 : i32, i32
  }
  func.func @transform_5(%arg0: i32) -> (i32, i32) {
    %c0_i32 = arith.constant 0 : i32
    %c0_i32_0 = arith.constant 0 : i32
    %c0_i32_1 = arith.constant 0 : i32
    return %c0_i32, %c0_i32_0 : i32, i32
  }
}

</mosaic_0001>

<llo_original>
// kernel: tpu_custom_call.1
$region0: #{tpu_custom_call.1}
  #allocation0 [shape = 'u32[]', space=smem, size = 0x4, offset = 0x4, fixed_abs, tag = 'smem constant byte address 0x4 - core index']
  #allocation1 [shape = 'u32[144,128]{1,0:T(1,128)}', space=vmem, size = 0x12000, scoped, tag = 'internal scratch']
  %s0 = inlined_call_operand.hbm [shape: f32[8,128], index: 0, kind: input, shape index: {}]
  %s1 = inlined_call_operand.hbm [shape: f32[128,128], index: 1, kind: input, shape index: {}]
  %s2 = inlined_call_operand.hbm [shape: f32[3,128,128], index: 2, kind: input, shape index: {}]
  %s3 = inlined_call_operand.hbm [shape: f32[128,128], index: 3, kind: input, shape index: {}]
  %s4 = inlined_call_operand.hbm [shape: f32[16,128], index: 4, kind: input, shape index: {}]
  %s5 = inlined_call_operand.hbm [shape: f32[8,128], index: 5, kind: output, shape index: {}]
  %s6 = sld [smem:[#allocation0]]
  $region50: #{tpu_custom_call.1} parent=0
    _
  %s8 = ssub.s32 1, %s6
  %s9 = scalar_select 0, %s8, %s6
  $region1: #{tpu_custom_call.1} parent=0
    #allocation2 [shape = 'u8[4096]{0}', space=vmem, size = 0x1000, scoped, tag = 'input window, operand 0, single buffered']
    #allocation3 [shape = 's32[1]{0}', space=sflag, size = 0x4, scoped, tag = 'scoped memory for tpu_custom_call.1']
    #allocation4 [shape = 's32[1]{0}', space=sflag, size = 0x4, scoped, tag = 'scoped memory for tpu_custom_call.1']
    #allocation5 [shape = 'u8[65536]{0}', space=vmem, size = 0x10000, scoped, tag = 'input window, operand 1, single buffered']
    #allocation6 [shape = 's32[1]{0}', space=sflag, size = 0x4, scoped, tag = 'scoped memory for tpu_custom_call.1']
    #allocation7 [shape = 'u8[196608]{0}', space=vmem, size = 0x30000, scoped, tag = 'input window, operand 2, single buffered']
    #allocation8 [shape = 'u8[65536]{0}', space=vmem, size = 0x10000, scoped, tag = 'input window, operand 3, single buffered']
    #allocation9 [shape = 's32[1]{0}', space=sflag, size = 0x4, scoped, tag = 'scoped memory for tpu_custom_call.1']
    #allocation10 [shape = 'u8[8192]{0}', space=vmem, size = 0x2000, scoped, tag = 'input window, operand 4, single buffered']
    #allocation11 [shape = 'u8[4096]{0}', space=vmem, size = 0x1000, scoped, tag = 'output window, operand 0, single buffered']
    %10 = vsyncpa [#allocation3], 0
    %11 = vsyncpa [#allocation6], 0
    %12 = vsyncpa [#allocation9], 0
    %13 = vsyncpa [#allocation4], 0
    // Predicated region
    $region2: #{tpu_custom_call.1} parent=1 // pred_check
      _
    $region3: #{tpu_custom_call.1} parent=1 // pred_check_branch
      %15 = sbr.rel (0) target = $region5
    $region4: #{tpu_custom_call.1} parent=1 // pred_region
      %s17 = ssub.s32 128, 128
      %18 = vsyncadd [#allocation3], %s17
      %s20 = sshll.u32 [#allocation2], 4
      %s21 = int_to_ptr.vmem [resolvable:$true] %s20
      %23 = dma.hbm_to_vmem [thread:$0]  %s0, 128, %s21, [#allocation3]
    $region5: #{tpu_custom_call.1} parent=1 // pred_fallthru
      _
    // Predicated region
    $region6: #{tpu_custom_call.1} parent=1 // pred_check
      _
    $region7: #{tpu_custom_call.1} parent=1 // pred_check_branch
      %25 = sbr.rel (0) target = $region9
    $region8: #{tpu_custom_call.1} parent=1 // pred_region
      %s27 = ssub.s32 2048, 2048
      %28 = vsyncadd [#allocation6], %s27
      %s29 = sshll.u32 [#allocation5], 4
      %s30 = int_to_ptr.vmem [resolvable:$true] %s29
      %35 = dma.hbm_to_vmem [thread:$0]  %s1, 2048, %s30, [#allocation6], 128, 128, 8
    $region9: #{tpu_custom_call.1} parent=1 // pred_fallthru
      _
    // Predicated region
    $region10: #{tpu_custom_call.1} parent=1 // pred_check
      _
    $region11: #{tpu_custom_call.1} parent=1 // pred_check_branch
      %37 = sbr.rel (0) target = $region13
    $region12: #{tpu_custom_call.1} parent=1 // pred_region
      %s39 = ssub.s32 6144, 6144
      %40 = vsyncadd [#allocation6], %s39
      %s41 = sshll.u32 [#allocation7], 4
      %s42 = int_to_ptr.vmem [resolvable:$true] %s41
      %47 = dma.hbm_to_vmem [thread:$0]  %s2, 6144, %s42, [#allocation6], 128, 128, 8
    $region13: #{tpu_custom_call.1} parent=1 // pred_fallthru
      _
    // Predicated region
    $region14: #{tpu_custom_call.1} parent=1 // pred_check
      _
    $region15: #{tpu_custom_call.1} parent=1 // pred_check_branch
      %49 = sbr.rel (0) target = $region17
    $region16: #{tpu_custom_call.1} parent=1 // pred_region
      %s51 = ssub.s32 2048, 2048
      %52 = vsyncadd [#allocation9], %s51
      %s53 = sshll.u32 [#allocation8], 4
      %s54 = int_to_ptr.vmem [resolvable:$true] %s53
      %59 = dma.hbm_to_vmem [thread:$0]  %s3, 2048, %s54, [#allocation9], 128, 128, 8
    $region17: #{tpu_custom_call.1} parent=1 // pred_fallthru
      _
    // Predicated region
    $region18: #{tpu_custom_call.1} parent=1 // pred_check
      _
    $region19: #{tpu_custom_call.1} parent=1 // pred_check_branch
      %61 = sbr.rel (0) target = $region21
    $region20: #{tpu_custom_call.1} parent=1 // pred_region
      %s63 = ssub.s32 256, 256
      %64 = vsyncadd [#allocation9], %s63
      %s65 = sshll.u32 [#allocation10], 4
      %s66 = int_to_ptr.vmem [resolvable:$true] %s65
      %71 = dma.hbm_to_vmem [thread:$0]  %s4, 256, %s66, [#allocation9], 128, 128, 8
    $region21: #{tpu_custom_call.1} parent=1 // pred_fallthru
      _
    // Predicated region
    $region22: #{tpu_custom_call.1} parent=1 // pred_check
      _
    $region23: #{tpu_custom_call.1} parent=1 // pred_check_branch
      %73 = sbr.rel (0) target = $region25
    $region24: #{tpu_custom_call.1} parent=1 // pred_region
      %74 = dma.done [#allocation3], 128
    $region25: #{tpu_custom_call.1} parent=1 // pred_fallthru
      _
    // Predicated region
    $region26: #{tpu_custom_call.1} parent=1 // pred_check
      _
    $region27: #{tpu_custom_call.1} parent=1 // pred_check_branch
      %76 = sbr.rel (0) target = $region29
    $region28: #{tpu_custom_call.1} parent=1 // pred_region
      %77 = dma.done [#allocation6], 2048
    $region29: #{tpu_custom_call.1} parent=1 // pred_fallthru
      _
    // Predicated region
    $region30: #{tpu_custom_call.1} parent=1 // pred_check
      _
    $region31: #{tpu_custom_call.1} parent=1 // pred_check_branch
      %79 = sbr.rel (0) target = $region33
    $region32: #{tpu_custom_call.1} parent=1 // pred_region
      %80 = dma.done [#allocation6], 6144
    $region33: #{tpu_custom_call.1} parent=1 // pred_fallthru
      _
    // Predicated region
    $region34: #{tpu_custom_call.1} parent=1 // pred_check
      _
    $region35: #{tpu_custom_call.1} parent=1 // pred_check_branch
      %82 = sbr.rel (0) target = $region37
    $region36: #{tpu_custom_call.1} parent=1 // pred_region
      %83 = dma.done [#allocation9], 2048
    $region37: #{tpu_custom_call.1} parent=1 // pred_fallthru
      _
    // Predicated region
    $region38: #{tpu_custom_call.1} parent=1 // pred_check
      _
    $region39: #{tpu_custom_call.1} parent=1 // pred_check_branch
      %85 = sbr.rel (0) target = $region41
    $region40: #{tpu_custom_call.1} parent=1 // pred_region
      %86 = dma.done [#allocation9], 256
    $region41: #{tpu_custom_call.1} parent=1 // pred_fallthru
      _
    %v87 = vld [vmem:[#allocation10] sm:$0xff]
    %v88 = vld [vmem:[#allocation10 + $0x8] sm:$0xff]
    %v89 = vld [vmem:[#allocation2] sm:$0xff]
    %v90 = vld [vmem:[#allocation5] sm:$0xff]
    %v91 = vld [vmem:[#allocation5 + $0x8] sm:$0xff]
    %v92 = vld [vmem:[#allocation5 + $0x10] sm:$0xff]
    %v93 = vld [vmem:[#allocation5 + $0x18] sm:$0xff]
    %v94 = vld [vmem:[#allocation5 + $0x20] sm:$0xff]
    %v95 = vld [vmem:[#allocation5 + $0x28] sm:$0xff]
    %v96 = vld [vmem:[#allocation5 + $0x30] sm:$0xff]
    %v97 = vld [vmem:[#allocation5 + $0x38] sm:$0xff]
    %v98 = vld [vmem:[#allocation5 + $0x40] sm:$0xff]
    %v99 = vld [vmem:[#allocation5 + $0x48] sm:$0xff]
    %v100 = vld [vmem:[#allocation5 + $0x50] sm:$0xff]
    %v101 = vld [vmem:[#allocation5 + $0x58] sm:$0xff]
    %v102 = vld [vmem:[#allocation5 + $0x60] sm:$0xff]
    %v103 = vld [vmem:[#allocation5 + $0x68] sm:$0xff]
    %v104 = vld [vmem:[#allocation5 + $0x70] sm:$0xff]
    %v105 = vld [vmem:[#allocation5 + $0x78] sm:$0xff]
    %106 = vmatprep.subr.mxu0 0.0
    %107 = vmatpush1.msra.mxu0 %v90
    %108 = vmatprep.subr.mxu0 0.0
    %109 = vmatpush1.msra.mxu0 %v91
    %110 = vmatprep.subr.mxu0 0.0
    %111 = vmatpush1.msra.mxu0 %v92
    %112 = vmatprep.subr.mxu0 0.0
    %113 = vmatpush1.msra.mxu0 %v93
    %114 = vmatprep.subr.mxu0 0.0
    %115 = vmatpush1.msra.mxu0 %v94
    %116 = vmatprep.subr.mxu0 0.0
    %117 = vmatpush1.msra.mxu0 %v95
    %118 = vmatprep.subr.mxu0 0.0
    %119 = vmatpush1.msra.mxu0 %v96
    %120 = vmatprep.subr.mxu0 0.0
    %121 = vmatpush1.msra.mxu0 %v97
    %122 = vmatprep.subr.mxu0 0.0
    %123 = vmatpush1.msra.mxu0 %v98
    %124 = vmatprep.subr.mxu0 0.0
    %125 = vmatpush1.msra.mxu0 %v99
    %126 = vmatprep.subr.mxu0 0.0
    %127 = vmatpush1.msra.mxu0 %v100
    %128 = vmatprep.subr.mxu0 0.0
    %129 = vmatpush1.msra.mxu0 %v101
    %130 = vmatprep.subr.mxu0 0.0
    %131 = vmatpush1.msra.mxu0 %v102
    %132 = vmatprep.subr.mxu0 0.0
    %133 = vmatpush1.msra.mxu0 %v103
    %134 = vmatprep.subr.mxu0 0.0
    %135 = vmatpush1.msra.mxu0 %v104
    %136 = vmatprep.subr.mxu0 0.0
    %137 = vmatpush1.msra.mxu0 %v105
    %138 = vmatprep.subr.mxu0 0.0
    %139 = vmatpush1.msra.mxu0 0.0
    %140 = vmatprep.subr.mxu0 0.0
    %141 = vmatpush1.msra.mxu0 0.0
    %142 = vmatprep.subr.mxu0 0.0
    %143 = vmatpush1.msra.mxu0 0.0
    %144 = vmatprep.subr.mxu0 0.0
    %145 = vmatpush1.msra.mxu0 0.0
    %146 = vmatprep.subr.mxu0 0.0
    %147 = vmatpush1.msra.mxu0 0.0
    %148 = vmatprep.subr.mxu0 0.0
    %149 = vmatpush1.msra.mxu0 0.0
    %150 = vmatprep.subr.mxu0 0.0
    %151 = vmatpush1.msra.mxu0 0.0
    %152 = vmatprep.subr.mxu0 0.0
    %153 = vmatpush1.msra.mxu0 0.0
    %154 = vmatprep.subr.mxu0 0.0
    %155 = vmatpush1.msra.mxu0 0.0
    %156 = vmatprep.subr.mxu0 0.0
    %157 = vmatpush1.msra.mxu0 0.0
    %158 = vmatprep.subr.mxu0 0.0
    %159 = vmatpush1.msra.mxu0 0.0
    %160 = vmatprep.subr.mxu0 0.0
    %161 = vmatpush1.msra.mxu0 0.0
    %162 = vmatprep.subr.mxu0 0.0
    %163 = vmatpush1.msra.mxu0 0.0
    %164 = vmatprep.subr.mxu0 0.0
    %165 = vmatpush1.msra.mxu0 0.0
    %166 = vmatprep.subr.mxu0 0.0
    %167 = vmatpush1.msra.mxu0 0.0
    %168 = vmatprep.subr.mxu0 0.0
    %169 = vmatpush1.msra.mxu0 0.0
    %170 = vmatprep.mubr.f32.mxu0 0.0
    %171 = vmatmul.mubr.f32.gmra.mrb[0].mxu0 %v89
    %v172 = vpop.f32.mrb[0].mxu0
    %v173 = vadd.f32 0.0, %v172
    %v174 = vpop.f32.mrb[0].mxu0
    %175 = vdwg.mxu0
    %v176 = vrot.slane %v173, 4
    %v177 = vadd.f32 %v173, %v176
    %v178 = vrot.slane %v177, 2
    %v179 = vadd.f32 %v177, %v178
    %v180 = vrot.slane %v179, 1
    %v181 = vadd.f32 %v179, %v180
    %v182 = vrcp.pop 8.0
    %v183 = vmul.f32 %v181, %v182
    %v184 = vsub.f32 %v173, %v183
    %v185 = vmul.f32 %v184, %v184
    %v186 = vrot.slane %v185, 4
    %v187 = vadd.f32 %v185, %v186
    %v188 = vrot.slane %v187, 2
    %v189 = vadd.f32 %v187, %v188
    %v190 = vrot.slane %v189, 1
    %v191 = vadd.f32 %v189, %v190
    %v192 = vmul.f32 %v191, %v182
    %v193 = vadd.f32 %v192, 1e-05
    %v194 = vrsqrt.pop %v193
    %v195 = vmul.f32 %v184, %v194
    %v196 = vlaneseq
    %v197 = vshrl.u32 %v196, 7
    %v198 = vsub.s32 0, %v197
    %v199 = vrot.slane %v87, %v198
    %v200 = vmul.f32 %v195, %v199
    %v201 = vlaneseq
    %v202 = vshrl.u32 %v201, 7
    %v203 = vsub.s32 1, %v202
    %v204 = vrot.slane %v87, %v203
    %v205 = vadd.f32 %v200, %v204
    %v206 = vmax.f32 %v205, 0.0
    %v207 = vld [vmem:[#allocation7] sm:$0xff]
    %v208 = vld [vmem:[#allocation7 + $0x8] sm:$0xff]
    %v209 = vld [vmem:[#allocation7 + $0x10] sm:$0xff]
    %v210 = vld [vmem:[#allocation7 + $0x18] sm:$0xff]
    %v211 = vld [vmem:[#allocation7 + $0x20] sm:$0xff]
    %v212 = vld [vmem:[#allocation7 + $0x28] sm:$0xff]
    %v213 = vld [vmem:[#allocation7 + $0x30] sm:$0xff]
    %v214 = vld [vmem:[#allocation7 + $0x38] sm:$0xff]
    %v215 = vld [vmem:[#allocation7 + $0x40] sm:$0xff]
    %v216 = vld [vmem:[#allocation7 + $0x48] sm:$0xff]
    %v217 = vld [vmem:[#allocation7 + $0x50] sm:$0xff]
    %v218 = vld [vmem:[#allocation7 + $0x58] sm:$0xff]
    %v219 = vld [vmem:[#allocation7 + $0x60] sm:$0xff]
    %v220 = vld [vmem:[#allocation7 + $0x68] sm:$0xff]
    %v221 = vld [vmem:[#allocation7 + $0x70] sm:$0xff]
    %v222 = vld [vmem:[#allocation7 + $0x78] sm:$0xff]
    %223 = vmatprep.subr.mxu0 0.0
    %224 = vmatpush1.msra.mxu0 %v207
    %225 = vmatprep.subr.mxu0 0.0
    %226 = vmatpush1.msra.mxu0 %v208
    %227 = vmatprep.subr.mxu0 0.0
    %228 = vmatpush1.msra.mxu0 %v209
    %229 = vmatprep.subr.mxu0 0.0
    %230 = vmatpush1.msra.mxu0 %v210
    %231 = vmatprep.subr.mxu0 0.0
    %232 = vmatpush1.msra.mxu0 %v211
    %233 = vmatprep.subr.mxu0 0.0
    %234 = vmatpush1.msra.mxu0 %v212
    %235 = vmatprep.subr.mxu0 0.0
    %236 = vmatpush1.msra.mxu0 %v213
    %237 = vmatprep.subr.mxu0 0.0
    %238 = vmatpush1.msra.mxu0 %v214
    %239 = vmatprep.subr.mxu0 0.0
    %240 = vmatpush1.msra.mxu0 %v215
    %241 = vmatprep.subr.mxu0 0.0
    %242 = vmatpush1.msra.mxu0 %v216
    %243 = vmatprep.subr.mxu0 0.0
    %244 = vmatpush1.msra.mxu0 %v217
    %245 = vmatprep.subr.mxu0 0.0
    %246 = vmatpush1.msra.mxu0 %v218
    %247 = vmatprep.subr.mxu0 0.0
    %248 = vmatpush1.msra.mxu0 %v219
    %249 = vmatprep.subr.mxu0 0.0
    %250 = vmatpush1.msra.mxu0 %v220
    %251 = vmatprep.subr.mxu0 0.0
    %252 = vmatpush1.msra.mxu0 %v221
    %253 = vmatprep.subr.mxu0 0.0
    %254 = vmatpush1.msra.mxu0 %v222
    %255 = vmatprep.subr.mxu0 0.0
    %256 = vmatpush1.msra.mxu0 0.0
    %257 = vmatprep.subr.mxu0 0.0
    %258 = vmatpush1.msra.mxu0 0.0
    %259 = vmatprep.subr.mxu0 0.0
    %260 = vmatpush1.msra.mxu0 0.0
    %261 = vmatprep.subr.mxu0 0.0
    %262 = vmatpush1.msra.mxu0 0.0
    %263 = vmatprep.subr.mxu0 0.0
    %264 = vmatpush1.msra.mxu0 0.0
    %265 = vmatprep.subr.mxu0 0.0
    %266 = vmatpush1.msra.mxu0 0.0
    %267 = vmatprep.subr.mxu0 0.0
    %268 = vmatpush1.msra.mxu0 0.0
    %269 = vmatprep.subr.mxu0 0.0
    %270 = vmatpush1.msra.mxu0 0.0
    %271 = vmatprep.subr.mxu0 0.0
    %272 = vmatpush1.msra.mxu0 0.0
    %273 = vmatprep.subr.mxu0 0.0
    %274 = vmatpush1.msra.mxu0 0.0
    %275 = vmatprep.subr.mxu0 0.0
    %276 = vmatpush1.msra.mxu0 0.0
    %277 = vmatprep.subr.mxu0 0.0
    %278 = vmatpush1.msra.mxu0 0.0
    %279 = vmatprep.subr.mxu0 0.0
    %280 = vmatpush1.msra.mxu0 0.0
    %281 = vmatprep.subr.mxu0 0.0
    %282 = vmatpush1.msra.mxu0 0.0
    %283 = vmatprep.subr.mxu0 0.0
    %284 = vmatpush1.msra.mxu0 0.0
    %285 = vmatprep.subr.mxu0 0.0
    %286 = vmatpush1.msra.mxu0 0.0
    %287 = vmatprep.mubr.f32.mxu0 0.0
    %288 = vmatmul.mubr.f32.gmra.mrb[0].mxu0 %v206
    %v289 = vpop.f32.mrb[0].mxu0
    %v290 = vadd.f32 0.0, %v289
    %v291 = vpop.f32.mrb[0].mxu0
    %292 = vdwg.mxu0
    %v293 = vrot.slane %v290, 4
    %v294 = vadd.f32 %v290, %v293
    %v295 = vrot.slane %v294, 2
    %v296 = vadd.f32 %v294, %v295
    %v297 = vrot.slane %v296, 1
    %v298 = vadd.f32 %v296, %v297
    %v299 = vmul.f32 %v298, %v182
    %v300 = vsub.f32 %v290, %v299
    %v301 = vmul.f32 %v300, %v300
    %v302 = vrot.slane %v301, 4
    %v303 = vadd.f32 %v301, %v302
    %v304 = vrot.slane %v303, 2
    %v305 = vadd.f32 %v303, %v304
    %v306 = vrot.slane %v305, 1
    %v307 = vadd.f32 %v305, %v306
    %v308 = vmul.f32 %v307, %v182
    %v309 = vadd.f32 %v308, 1e-05
    %v310 = vrsqrt.pop %v309
    %v311 = vmul.f32 %v300, %v310
    %v312 = vlaneseq
    %v313 = vshrl.u32 %v312, 7
    %v314 = vsub.s32 2, %v313
    %v315 = vrot.slane %v87, %v314
    %v316 = vmul.f32 %v311, %v315
    %v317 = vlaneseq
    %v318 = vshrl.u32 %v317, 7
    %v319 = vsub.s32 3, %v318
    %v320 = vrot.slane %v87, %v319
    %v321 = vadd.f32 %v316, %v320
    %v322 = vmax.f32 %v321, 0.0
    %s323 = scalar_lea.vmem [#allocation7], 128
    %v324 = vld [vmem:[%s323] sm:$0xff]
    %v325 = vld [vmem:[%s323 + $0x8] sm:$0xff]
    %v326 = vld [vmem:[%s323 + $0x10] sm:$0xff]
    %v327 = vld [vmem:[%s323 + $0x18] sm:$0xff]
    %v328 = vld [vmem:[%s323 + $0x20] sm:$0xff]
    %v329 = vld [vmem:[%s323 + $0x28] sm:$0xff]
    %v330 = vld [vmem:[%s323 + $0x30] sm:$0xff]
    %v331 = vld [vmem:[%s323 + $0x38] sm:$0xff]
    %v332 = vld [vmem:[%s323 + $0x40] sm:$0xff]
    %v333 = vld [vmem:[%s323 + $0x48] sm:$0xff]
    %v334 = vld [vmem:[%s323 + $0x50] sm:$0xff]
    %v335 = vld [vmem:[%s323 + $0x58] sm:$0xff]
    %v336 = vld [vmem:[%s323 + $0x60] sm:$0xff]
    %v337 = vld [vmem:[%s323 + $0x68] sm:$0xff]
    %v338 = vld [vmem:[%s323 + $0x70] sm:$0xff]
    %v339 = vld [vmem:[%s323 + $0x78] sm:$0xff]
    %340 = vmatprep.subr.mxu0 0.0
    %341 = vmatpush1.msra.mxu0 %v324
    %342 = vmatprep.subr.mxu0 0.0
    %343 = vmatpush1.msra.mxu0 %v325
    %344 = vmatprep.subr.mxu0 0.0
    %345 = vmatpush1.msra.mxu0 %v326
    %346 = vmatprep.subr.mxu0 0.0
    %347 = vmatpush1.msra.mxu0 %v327
    %348 = vmatprep.subr.mxu0 0.0
    %349 = vmatpush1.msra.mxu0 %v328
    %350 = vmatprep.subr.mxu0 0.0
    %351 = vmatpush1.msra.mxu0 %v329
    %352 = vmatprep.subr.mxu0 0.0
    %353 = vmatpush1.msra.mxu0 %v330
    %354 = vmatprep.subr.mxu0 0.0
    %355 = vmatpush1.msra.mxu0 %v331
    %356 = vmatprep.subr.mxu0 0.0
    %357 = vmatpush1.msra.mxu0 %v332
    %358 = vmatprep.subr.mxu0 0.0
    %359 = vmatpush1.msra.mxu0 %v333
    %360 = vmatprep.subr.mxu0 0.0
    %361 = vmatpush1.msra.mxu0 %v334
    %362 = vmatprep.subr.mxu0 0.0
    %363 = vmatpush1.msra.mxu0 %v335
    %364 = vmatprep.subr.mxu0 0.0
    %365 = vmatpush1.msra.mxu0 %v336
    %366 = vmatprep.subr.mxu0 0.0
    %367 = vmatpush1.msra.mxu0 %v337
    %368 = vmatprep.subr.mxu0 0.0
    %369 = vmatpush1.msra.mxu0 %v338
    %370 = vmatprep.subr.mxu0 0.0
    %371 = vmatpush1.msra.mxu0 %v339
    %372 = vmatprep.subr.mxu0 0.0
    %373 = vmatpush1.msra.mxu0 0.0
    %374 = vmatprep.subr.mxu0 0.0
    %375 = vmatpush1.msra.mxu0 0.0
    %376 = vmatprep.subr.mxu0 0.0
    %377 = vmatpush1.msra.mxu0 0.0
    %378 = vmatprep.subr.mxu0 0.0
    %379 = vmatpush1.msra.mxu0 0.0
    %380 = vmatprep.subr.mxu0 0.0
    %381 = vmatpush1.msra.mxu0 0.0
    %382 = vmatprep.subr.mxu0 0.0
    %383 = vmatpush1.msra.mxu0 0.0
    %384 = vmatprep.subr.mxu0 0.0
    %385 = vmatpush1.msra.mxu0 0.0
    %386 = vmatprep.subr.mxu0 0.0
    %387 = vmatpush1.msra.mxu0 0.0
    %388 = vmatprep.subr.mxu0 0.0
    %389 = vmatpush1.msra.mxu0 0.0
    %390 = vmatprep.subr.mxu0 0.0
    %391 = vmatpush1.msra.mxu0 0.0
    %392 = vmatprep.subr.mxu0 0.0
    %393 = vmatpush1.msra.mxu0 0.0
    %394 = vmatprep.subr.mxu0 0.0
    %395 = vmatpush1.msra.mxu0 0.0
    %396 = vmatprep.subr.mxu0 0.0
    %397 = vmatpush1.msra.mxu0 0.0
    %398 = vmatprep.subr.mxu0 0.0
    %399 = vmatpush1.msra.mxu0 0.0
    %400 = vmatprep.subr.mxu0 0.0
    %401 = vmatpush1.msra.mxu0 0.0
    %402 = vmatprep.subr.mxu0 0.0
    %403 = vmatpush1.msra.mxu0 0.0
    %404 = vmatprep.mubr.f32.mxu0 0.0
    %405 = vmatmul.mubr.f32.gmra.mrb[0].mxu0 %v322
    %v406 = vpop.f32.mrb[0].mxu0
    %v407 = vadd.f32 0.0, %v406
    %v408 = vpop.f32.mrb[0].mxu0
    %409 = vdwg.mxu0
    %v410 = vrot.slane %v407, 4
    %v411 = vadd.f32 %v407, %v410
    %v412 = vrot.slane %v411, 2
    %v413 = vadd.f32 %v411, %v412
    %v414 = vrot.slane %v413, 1
    %v415 = vadd.f32 %v413, %v414
    %v416 = vmul.f32 %v415, %v182
    %v417 = vsub.f32 %v407, %v416
    %v418 = vmul.f32 %v417, %v417
    %v419 = vrot.slane %v418, 4
    %v420 = vadd.f32 %v418, %v419
    %v421 = vrot.slane %v420, 2
    %v422 = vadd.f32 %v420, %v421
    %v423 = vrot.slane %v422, 1
    %v424 = vadd.f32 %v422, %v423
    %v425 = vmul.f32 %v424, %v182
    %v426 = vadd.f32 %v425, 1e-05
    %v427 = vrsqrt.pop %v426
    %v428 = vmul.f32 %v417, %v427
    %v429 = vlaneseq
    %v430 = vshrl.u32 %v429, 7
    %v431 = vsub.s32 4, %v430
    %v432 = vrot.slane %v87, %v431
    %v433 = vmul.f32 %v428, %v432
    %v434 = vlaneseq
    %v435 = vshrl.u32 %v434, 7
    %v436 = vsub.s32 5, %v435
    %v437 = vrot.slane %v87, %v436
    %v438 = vadd.f32 %v433, %v437
    %v439 = vmax.f32 %v438, 0.0
    %s440 = scalar_lea.vmem [#allocation7], 256
    %v441 = vld [vmem:[%s440] sm:$0xff]
    %v442 = vld [vmem:[%s440 + $0x8] sm:$0xff]
    %v443 = vld [vmem:[%s440 + $0x10] sm:$0xff]
    %v444 = vld [vmem:[%s440 + $0x18] sm:$0xff]
    %v445 = vld [vmem:[%s440 + $0x20] sm:$0xff]
    %v446 = vld [vmem:[%s440 + $0x28] sm:$0xff]
    %v447 = vld [vmem:[%s440 + $0x30] sm:$0xff]
    %v448 = vld [vmem:[%s440 + $0x38] sm:$0xff]
    %v449 = vld [vmem:[%s440 + $0x40] sm:$0xff]
    %v450 = vld [vmem:[%s440 + $0x48] sm:$0xff]
    %v451 = vld [vmem:[%s440 + $0x50] sm:$0xff]
    %v452 = vld [vmem:[%s440 + $0x58] sm:$0xff]
    %v453 = vld [vmem:[%s440 + $0x60] sm:$0xff]
    %v454 = vld [vmem:[%s440 + $0x68] sm:$0xff]
    %v455 = vld [vmem:[%s440 + $0x70] sm:$0xff]
    %v456 = vld [vmem:[%s440 + $0x78] sm:$0xff]
    %457 = vmatprep.subr.mxu0 0.0
    %458 = vmatpush1.msra.mxu0 %v441
    %459 = vmatprep.subr.mxu0 0.0
    %460 = vmatpush1.msra.mxu0 %v442
    %461 = vmatprep.subr.mxu0 0.0
    %462 = vmatpush1.msra.mxu0 %v443
    %463 = vmatprep.subr.mxu0 0.0
    %464 = vmatpush1.msra.mxu0 %v444
    %465 = vmatprep.subr.mxu0 0.0
    %466 = vmatpush1.msra.mxu0 %v445
    %467 = vmatprep.subr.mxu0 0.0
    %468 = vmatpush1.msra.mxu0 %v446
    %469 = vmatprep.subr.mxu0 0.0
    %470 = vmatpush1.msra.mxu0 %v447
    %471 = vmatprep.subr.mxu0 0.0
    %472 = vmatpush1.msra.mxu0 %v448
    %473 = vmatprep.subr.mxu0 0.0
    %474 = vmatpush1.msra.mxu0 %v449
    %475 = vmatprep.subr.mxu0 0.0
    %476 = vmatpush1.msra.mxu0 %v450
    %477 = vmatprep.subr.mxu0 0.0
    %478 = vmatpush1.msra.mxu0 %v451
    %479 = vmatprep.subr.mxu0 0.0
    %480 = vmatpush1.msra.mxu0 %v452
    %481 = vmatprep.subr.mxu0 0.0
    %482 = vmatpush1.msra.mxu0 %v453
    %483 = vmatprep.subr.mxu0 0.0
    %484 = vmatpush1.msra.mxu0 %v454
    %485 = vmatprep.subr.mxu0 0.0
    %486 = vmatpush1.msra.mxu0 %v455
    %487 = vmatprep.subr.mxu0 0.0
    %488 = vmatpush1.msra.mxu0 %v456
    %489 = vmatprep.subr.mxu0 0.0
    %490 = vmatpush1.msra.mxu0 0.0
    %491 = vmatprep.subr.mxu0 0.0
    %492 = vmatpush1.msra.mxu0 0.0
    %493 = vmatprep.subr.mxu0 0.0
    %494 = vmatpush1.msra.mxu0 0.0
    %495 = vmatprep.subr.mxu0 0.0
    %496 = vmatpush1.msra.mxu0 0.0
    %497 = vmatprep.subr.mxu0 0.0
    %498 = vmatpush1.msra.mxu0 0.0
    %499 = vmatprep.subr.mxu0 0.0
    %500 = vmatpush1.msra.mxu0 0.0
    %501 = vmatprep.subr.mxu0 0.0
    %502 = vmatpush1.msra.mxu0 0.0
    %503 = vmatprep.subr.mxu0 0.0
    %504 = vmatpush1.msra.mxu0 0.0
    %505 = vmatprep.subr.mxu0 0.0
    %506 = vmatpush1.msra.mxu0 0.0
    %507 = vmatprep.subr.mxu0 0.0
    %508 = vmatpush1.msra.mxu0 0.0
    %509 = vmatprep.subr.mxu0 0.0
    %510 = vmatpush1.msra.mxu0 0.0
    %511 = vmatprep.subr.mxu0 0.0
    %512 = vmatpush1.msra.mxu0 0.0
    %513 = vmatprep.subr.mxu0 0.0
    %514 = vmatpush1.msra.mxu0 0.0
    %515 = vmatprep.subr.mxu0 0.0
    %516 = vmatpush1.msra.mxu0 0.0
    %517 = vmatprep.subr.mxu0 0.0
    %518 = vmatpush1.msra.mxu0 0.0
    %519 = vmatprep.subr.mxu0 0.0
    %520 = vmatpush1.msra.mxu0 0.0
    %521 = vmatprep.mubr.f32.mxu0 0.0
    %522 = vmatmul.mubr.f32.gmra.mrb[0].mxu0 %v439
    %v523 = vpop.f32.mrb[0].mxu0
    %v524 = vadd.f32 0.0, %v523
    %v525 = vpop.f32.mrb[0].mxu0
    %526 = vdwg.mxu0
    %v527 = vrot.slane %v524, 4
    %v528 = vadd.f32 %v524, %v527
    %v529 = vrot.slane %v528, 2
    %v530 = vadd.f32 %v528, %v529
    %v531 = vrot.slane %v530, 1
    %v532 = vadd.f32 %v530, %v531
    %v533 = vmul.f32 %v532, %v182
    %v534 = vsub.f32 %v524, %v533
    %v535 = vmul.f32 %v534, %v534
    %v536 = vrot.slane %v535, 4
    %v537 = vadd.f32 %v535, %v536
    %v538 = vrot.slane %v537, 2
    %v539 = vadd.f32 %v537, %v538
    %v540 = vrot.slane %v539, 1
    %v541 = vadd.f32 %v539, %v540
    %v542 = vmul.f32 %v541, %v182
    %v543 = vadd.f32 %v542, 1e-05
    %v544 = vrsqrt.pop %v543
    %v545 = vmul.f32 %v534, %v544
    %v546 = vlaneseq
    %v547 = vshrl.u32 %v546, 7
    %v548 = vsub.s32 6, %v547
    %v549 = vrot.slane %v87, %v548
    %v550 = vmul.f32 %v545, %v549
    %v551 = vlaneseq
    %v552 = vshrl.u32 %v551, 7
    %v553 = vsub.s32 7, %v552
    %v554 = vrot.slane %v87, %v553
    %v555 = vadd.f32 %v550, %v554
    %v556 = vmax.f32 %v555, 0.0
    %v557 = vld [vmem:[#allocation8] sm:$0xff]
    %v558 = vld [vmem:[#allocation8 + $0x8] sm:$0xff]
    %v559 = vld [vmem:[#allocation8 + $0x10] sm:$0xff]
    %v560 = vld [vmem:[#allocation8 + $0x18] sm:$0xff]
    %v561 = vld [vmem:[#allocation8 + $0x20] sm:$0xff]
    %v562 = vld [vmem:[#allocation8 + $0x28] sm:$0xff]
    %v563 = vld [vmem:[#allocation8 + $0x30] sm:$0xff]
    %v564 = vld [vmem:[#allocation8 + $0x38] sm:$0xff]
    %v565 = vld [vmem:[#allocation8 + $0x40] sm:$0xff]
    %v566 = vld [vmem:[#allocation8 + $0x48] sm:$0xff]
    %v567 = vld [vmem:[#allocation8 + $0x50] sm:$0xff]
    %v568 = vld [vmem:[#allocation8 + $0x58] sm:$0xff]
    %v569 = vld [vmem:[#allocation8 + $0x60] sm:$0xff]
    %v570 = vld [vmem:[#allocation8 + $0x68] sm:$0xff]
    %v571 = vld [vmem:[#allocation8 + $0x70] sm:$0xff]
    %v572 = vld [vmem:[#allocation8 + $0x78] sm:$0xff]
    %v573 = vlaneseq
    %v574 = vshrl.u32 %v573, 7
    %v575 = vsub.s32 0, %v574
    %v576 = vrot.slane %v88, %v575
    %577 = vmatprep.subr.mxu0 0.0
    %578 = vmatpush1.msra.mxu0 %v557
    %579 = vmatprep.subr.mxu0 0.0
    %580 = vmatpush1.msra.mxu0 %v558
    %581 = vmatprep.subr.mxu0 0.0
    %582 = vmatpush1.msra.mxu0 %v559
    %583 = vmatprep.subr.mxu0 0.0
    %584 = vmatpush1.msra.mxu0 %v560
    %585 = vmatprep.subr.mxu0 0.0
    %586 = vmatpush1.msra.mxu0 %v561
    %587 = vmatprep.subr.mxu0 0.0
    %588 = vmatpush1.msra.mxu0 %v562
    %589 = vmatprep.subr.mxu0 0.0
    %590 = vmatpush1.msra.mxu0 %v563
    %591 = vmatprep.subr.mxu0 0.0
    %592 = vmatpush1.msra.mxu0 %v564
    %593 = vmatprep.subr.mxu0 0.0
    %594 = vmatpush1.msra.mxu0 %v565
    %595 = vmatprep.subr.mxu0 0.0
    %596 = vmatpush1.msra.mxu0 %v566
    %597 = vmatprep.subr.mxu0 0.0
    %598 = vmatpush1.msra.mxu0 %v567
    %599 = vmatprep.subr.mxu0 0.0
    %600 = vmatpush1.msra.mxu0 %v568
    %601 = vmatprep.subr.mxu0 0.0
    %602 = vmatpush1.msra.mxu0 %v569
    %603 = vmatprep.subr.mxu0 0.0
    %604 = vmatpush1.msra.mxu0 %v570
    %605 = vmatprep.subr.mxu0 0.0
    %606 = vmatpush1.msra.mxu0 %v571
    %607 = vmatprep.subr.mxu0 0.0
    %608 = vmatpush1.msra.mxu0 %v572
    %609 = vmatprep.subr.mxu0 0.0
    %610 = vmatpush1.msra.mxu0 0.0
    %611 = vmatprep.subr.mxu0 0.0
    %612 = vmatpush1.msra.mxu0 0.0
    %613 = vmatprep.subr.mxu0 0.0
    %614 = vmatpush1.msra.mxu0 0.0
    %615 = vmatprep.subr.mxu0 0.0
    %616 = vmatpush1.msra.mxu0 0.0
    %617 = vmatprep.subr.mxu0 0.0
    %618 = vmatpush1.msra.mxu0 0.0
    %619 = vmatprep.subr.mxu0 0.0
    %620 = vmatpush1.msra.mxu0 0.0
    %621 = vmatprep.subr.mxu0 0.0
    %622 = vmatpush1.msra.mxu0 0.0
    %623 = vmatprep.subr.mxu0 0.0
    %624 = vmatpush1.msra.mxu0 0.0
    %625 = vmatprep.subr.mxu0 0.0
    %626 = vmatpush1.msra.mxu0 0.0
    %627 = vmatprep.subr.mxu0 0.0
    %628 = vmatpush1.msra.mxu0 0.0
    %629 = vmatprep.subr.mxu0 0.0
    %630 = vmatpush1.msra.mxu0 0.0
    %631 = vmatprep.subr.mxu0 0.0
    %632 = vmatpush1.msra.mxu0 0.0
    %633 = vmatprep.subr.mxu0 0.0
    %634 = vmatpush1.msra.mxu0 0.0
    %635 = vmatprep.subr.mxu0 0.0
    %636 = vmatpush1.msra.mxu0 0.0
    %637 = vmatprep.subr.mxu0 0.0
    %638 = vmatpush1.msra.mxu0 0.0
    %639 = vmatprep.subr.mxu0 0.0
    %640 = vmatpush1.msra.mxu0 0.0
    %641 = vmatprep.mubr.f32.mxu0 0.0
    %642 = vmatmul.mubr.f32.gmra.mrb[0].mxu0 %v556
    %v643 = vpop.f32.mrb[0].mxu0
    %v644 = vadd.f32 %v576, %v643
    %v645 = vpop.f32.mrb[0].mxu0
    %646 = vdwg.mxu0
    %647 = vst [vmem:[#allocation11] sm:$0xff] %v644
    // Predicated region
    $region42: #{tpu_custom_call.1} parent=1 // pred_check
      _
    $region43: #{tpu_custom_call.1} parent=1 // pred_check_branch
      %649 = sbr.rel (0) target = $region45
    $region44: #{tpu_custom_call.1} parent=1 // pred_region
      %s651 = ssub.s32 128, 128
      %652 = vsyncadd [#allocation4], %s651
      %s654 = sshll.u32 [#allocation11], 4
      %s655 = int_to_ptr.vmem [resolvable:$true] %s654
      %657 = dma.vmem_to_hbm [thread:$0]  %s655, 128, %s5, [#allocation4]
    $region45: #{tpu_custom_call.1} parent=1 // pred_fallthru
      _
    // Predicated region
    $region46: #{tpu_custom_call.1} parent=1 // pred_check
      _
    $region47: #{tpu_custom_call.1} parent=1 // pred_check_branch
      %659 = sbr.rel (0) target = $region49
    $region48: #{tpu_custom_call.1} parent=1 // pred_region
      %660 = dma.done [#allocation4], 128
    $region49: #{tpu_custom_call.1} parent=1 // pred_fallthru
      _
    %661 = vsyncpa [#allocation3], 1
    %662 = vsyncpa [#allocation6], 1
    %663 = vsyncpa [#allocation9], 1
    %664 = vsyncpa [#allocation4], 1

</llo_original>
